<compile_context>
chip_gen: v7x
topology: tpu7x:2x2x1
jax: 0.10.0
libtpu: 0.0.40
codegen_flags: <defaults>
</compile_context>

<pallas_src>
import functools

import jax
import jax.numpy as jnp
from jax import lax
from jax.experimental import pallas as pl
from jax.experimental.pallas import tpu as pltpu


_VMEM_LIMIT_BYTES = 32 * 1024 * 1024    # <= physical VMEM on v5e/v6e/v7x
_BLOCK_BUDGET_BYTES = 20 * 1024 * 1024  # pipelined blocks + in-kernel f32 temps
_E_BUDGET_BYTES = 4 * 1024 * 1024       # max size of the mask-expansion matrix


def _sublane_align(dtype):
    """Sublane alignment for the second-minor block dim (dtype-aware)."""
    return max(8, 32 // jnp.dtype(dtype).itemsize)


def _pick_rows(s_total, per_row_bytes, align, reserved=0):
    """Rows of the reduction axis per grid step, from a VMEM byte budget."""
    budget = max(_BLOCK_BUDGET_BYTES - reserved, per_row_bytes * align)
    ts = max(1, budget // max(per_row_bytes, 1))
    if ts >= s_total:
        return s_total                      # one block covers the whole axis
    return max(align, (ts // align) * align)


def _row_block_index(p, s, ns_grid, ns_total):
    """Reduction-block index for (partition p, step s).

    Clamped so the DMA never reads a block whose origin lies past the end of
    the array; the kernels mask duplicate / tail rows, so clamping never
    changes the result.
    """
    return jnp.minimum(p * ns_grid + s, ns_total - 1)


# ---------------------------------------------------------------------------
# Kernels: all accumulate raw f32 sums into a resident output block.
# ---------------------------------------------------------------------------

def _mean_sum_kernel(seq_ref, out_ref, *, ts, ns_grid, s_total):
    p = pl.program_id(0)
    s = pl.program_id(2)

    @pl.when(s == 0)
    def _():
        out_ref[...] = jnp.zeros_like(out_ref)

    x = seq_ref[...].astype(jnp.float32)                      # (ts, tnh)
    row0 = (p * ns_grid + s) * ts
    rows = lax.broadcasted_iota(jnp.int32, x.shape, 0) + row0
    x = jnp.where(rows < s_total, x, 0.0)                     # ragged-tail mask
    out_ref[...] += jnp.sum(x, axis=0, keepdims=True)[None]


def _masked_sum_kernel_2d(seq_ref, msk_ref, e_ref, out_ref, *,
                          ts, tn, ns_grid, s_total, n_total):
    """Lane-dense masked sum on an (S, N*H) view of seq."""
    p = pl.program_id(0)
    j = pl.program_id(1)
    s = pl.program_id(2)

    @pl.when(s == 0)
    def _():
        out_ref[...] = jnp.zeros_like(out_ref)

    m = msk_ref[...]                                          # (ts, tn) f32
    cols = lax.broadcasted_iota(jnp.int32, m.shape, 1) + j * tn
    m = jnp.where(cols < n_total, m, 0.0)                     # node-tail mask
    # Expand mask across H lanes on the otherwise-idle MXU:
    #   m2[i, n*H + h] == m[i, n]   (E is block-diagonal: kron(I, ones(1, H))).
    m2 = jnp.dot(m, e_ref[...], preferred_element_type=jnp.float32)

    x = seq_ref[...].astype(jnp.float32)                      # (ts, tn*H)
    row0 = (p * ns_grid + s) * ts
    rows = lax.broadcasted_iota(jnp.int32, x.shape, 0) + row0
    prod = jnp.where(rows < s_total, x * m2, 0.0)             # ragged-tail mask
    out_ref[...] += jnp.sum(prod, axis=0, keepdims=True)[None]


def _masked_sum_kernel_3d(seq_ref, msk_ref, out_ref, *, ts, ns_grid, s_total):
    """3-D masked sum (used when H % 128 == 0 -> already lane-dense)."""
    p = pl.program_id(0)
    s = pl.program_id(2)

    @pl.when(s == 0)
    def _():
        out_ref[...] = jnp.zeros_like(out_ref)

    x = seq_ref[...].astype(jnp.float32)                      # (ts, tn, H)
    m = msk_ref[...]                                          # (ts, tn, 1) f32
    row0 = (p * ns_grid + s) * ts
    rows = lax.broadcasted_iota(jnp.int32, x.shape, 0) + row0
    prod = jnp.where(rows < s_total, x * m, 0.0)              # ragged-tail mask
    out_ref[...] += jnp.sum(prod, axis=0)[None]


# ---------------------------------------------------------------------------
# Wrapper
# ---------------------------------------------------------------------------

def avg_readout(seq, msk=None):
    """Pallas implementation of AvgReadout.forward.

    seq: (S, N, H);  msk: optional (S, N).  Returns (N, H) in seq.dtype.
    """
    S, N, H = seq.shape
    NH = N * H
    out_dtype = seq.dtype
    itemsize = jnp.dtype(seq.dtype).itemsize
    align = _sublane_align(seq.dtype)
    sem3 = ("parallel", "parallel", "arbitrary")

    # ---------------- mean branch ----------------
    if msk is None:
        seq2d = seq.reshape(S, NH)                 # lane-dense view (free)
        per_elem = 2 * itemsize + 3 * 4            # dbl-buffered block + f32 temps
        budget_elems = _BLOCK_BUDGET_BYTES // per_elem
        if NH * align <= budget_elems:
            tnh, nj = NH, 1                        # full width (always legal)
        else:
            tnh = max(128, ((budget_elems // align) // 128) * 128)
            nj = pl.cdiv(NH, tnh)
        ts = _pick_rows(S, tnh * per_elem, align)
        ns_total = pl.cdiv(S, ts)
        p_parts = 2 if (nj == 1 and ns_total >= 2) else 1   # feed both v7x TCs
        ns_grid = pl.cdiv(ns_total, p_parts)

        kernel = functools.partial(_mean_sum_kernel, ts=ts, ns_grid=ns_grid,
                                   s_total=S)
        partial_sums = pl.pallas_call(
            kernel,
            out_shape=jax.ShapeDtypeStruct((p_parts, 1, NH), jnp.float32),
            grid=(p_parts, nj, ns_grid),
            in_specs=[pl.BlockSpec(
                (ts, tnh),
                lambda p, j, s: (_row_block_index(p, s, ns_grid, ns_total), j))],
            out_specs=pl.BlockSpec((1, 1, tnh), lambda p, j, s: (p, 0, j)),
            compiler_params=pltpu.CompilerParams(
                dimension_semantics=sem3,
                vmem_limit_bytes=_VMEM_LIMIT_BYTES),
        )(seq2d)
        out = partial_sums.sum(axis=0).reshape(N, H) / jnp.float32(S)
        return out.astype(out_dtype)

    # ---------------- masked branch ----------------
    msk_f = msk.astype(jnp.float32)                # (S, N); bool/int masks OK
    denom = jnp.sum(msk_f)                         # scalar; 0 -> inf/nan (= torch)

    use_lane_dense = (H % 128 != 0)
    tn = N if N <= 128 else 128
    e_bytes = tn * tn * H * 4
    if e_bytes > _E_BUDGET_BYTES:
        use_lane_dense = False                     # rare huge-N/H corner

    if use_lane_dense:
        # Lane-dense path: seq as (S, N*H), mask expanded across H in-kernel.
        seq2d = seq.reshape(S, NH)
        expand = jnp.kron(jnp.eye(tn, dtype=jnp.float32),
                          jnp.ones((1, H), jnp.float32))      # (tn, tn*H)
        tnh = tn * H
        nj = pl.cdiv(N, tn)
        per_row = tnh * (2 * itemsize + 4 * 4) + tn * 4 * 3
        ts = _pick_rows(S, per_row, align, reserved=2 * e_bytes)
        ns_total = pl.cdiv(S, ts)
        p_parts = 2 if (nj == 1 and ns_total >= 2) else 1
        ns_grid = pl.cdiv(ns_total, p_parts)

        row_ix = lambda p, j, s: _row_block_index(p, s, ns_grid, ns_total)
        kernel = functools.partial(_masked_sum_kernel_2d, ts=ts, tn=tn,
                                   ns_grid=ns_grid, s_total=S, n_total=N)
        partial_sums = pl.pallas_call(
            kernel,
            out_shape=jax.ShapeDtypeStruct((p_parts, 1, NH), jnp.float32),
            grid=(p_parts, nj, ns_grid),
            in_specs=[
                pl.BlockSpec((ts, tnh), lambda p, j, s: (row_ix(p, j, s), j)),
                pl.BlockSpec((ts, tn), lambda p, j, s: (row_ix(p, j, s), j)),
                pl.BlockSpec((tn, tnh), lambda p, j, s: (0, 0)),
            ],
            out_specs=pl.BlockSpec((1, 1, tnh), lambda p, j, s: (p, 0, j)),
            compiler_params=pltpu.CompilerParams(
                dimension_semantics=sem3,
                vmem_limit_bytes=_VMEM_LIMIT_BYTES),
        )(seq2d, msk_f, expand)
        total = partial_sums.sum(axis=0).reshape(N, H)
    else:
        # 3-D path: lane-dense whenever H % 128 == 0 (the case that selects it);
        # also a correct fallback for shapes where the expansion matrix would
        # not fit in VMEM.
        msk3d = msk_f.reshape(S, N, 1)
        per_elem = 2 * itemsize + 4 * 4
        budget_elems = _BLOCK_BUDGET_BYTES // per_elem
        if N * H * align <= budget_elems:
            tn = N
        else:
            tn = max(8, min(N, ((budget_elems // (H * align)) // 8) * 8))
        nj = pl.cdiv(N, tn)
        pad_tn = -(-tn // 8) * 8
        # per-row bytes: dbl-buffered seq block + f32 temps + the (ts, tn, 1)
        # mask block (Mosaic pads its minor dim to 128 lanes).
        per_row = tn * H * per_elem + 2 * pad_tn * 128 * 4
        ts = _pick_rows(S, per_row, align)
        ns_total = pl.cdiv(S, ts)
        p_parts = 2 if (nj == 1 and ns_total >= 2) else 1
        ns_grid = pl.cdiv(ns_total, p_parts)

        row_ix = lambda p, j, s: _row_block_index(p, s, ns_grid, ns_total)
        kernel = functools.partial(_masked_sum_kernel_3d, ts=ts,
                                   ns_grid=ns_grid, s_total=S)
        partial_sums = pl.pallas_call(
            kernel,
            out_shape=jax.ShapeDtypeStruct((p_parts, N, H), jnp.float32),
            grid=(p_parts, nj, ns_grid),
            in_specs=[
                pl.BlockSpec((ts, tn, H),
                             lambda p, j, s: (row_ix(p, j, s), j, 0)),
                pl.BlockSpec((ts, tn, 1),
                             lambda p, j, s: (row_ix(p, j, s), j, 0)),
            ],
            out_specs=pl.BlockSpec((1, tn, H), lambda p, j, s: (p, j, 0)),
            compiler_params=pltpu.CompilerParams(
                dimension_semantics=sem3,
                vmem_limit_bytes=_VMEM_LIMIT_BYTES),
        )(seq, msk3d)
        total = partial_sums.sum(axis=0)

    out = total / denom
    return out.astype(out_dtype)


if __name__ == "__main__":
    key = jax.random.PRNGKey(0)
    k1, k2, k3, k4, k5, k6 = jax.random.split(key, 6)

    # --- small shapes consistent with the module (readout over axis 0) ---
    S, N, H = 8, 16, 32
    seq = jax.random.normal(k1, (S, N, H), dtype=jnp.float32)
    msk = (jax.random.uniform(k2, (S, N)) > 0.3).astype(jnp.float32)

    out_mean = jax.block_until_ready(avg_readout(seq))
    ref_mean = jnp.mean(seq, axis=0)
    assert out_mean.shape == (N, H)
    assert jnp.allclose(out_mean, ref_mean, atol=1e-5, rtol=1e-5), "mean mismatch"

    out_masked = jax.block_until_ready(avg_readout(seq, msk))
    ref_masked = jnp.sum(seq * msk[..., None], axis=0) / jnp.sum(msk)
    assert out_masked.shape == (N, H)
    assert jnp.allclose(out_masked, ref_masked, atol=1e-5, rtol=1e-5), \
        "masked mismatch"

    # --- shapes exercising multi-step blocking, ragged tails, the megacore
    #     partial-sum split + index clamp, and the 3-D (H % 128 == 0) path ---
    S2, N2, H2 = 610, 8, 512
    seq2 = jax.random.normal(k3, (S2, N2, H2), dtype=jnp.float32)
    msk2 = (jax.random.uniform(k4, (S2, N2)) > 0.5).astype(jnp.float32)

    out_mean2 = jax.block_until_ready(avg_readout(seq2))
    ref_mean2 = jnp.mean(seq2, axis=0)
    assert jnp.allclose(out_mean2, ref_mean2, atol=1e-4, rtol=1e-4), \
        "mean (tiled) mismatch"

    out_masked2 = jax.block_until_ready(avg_readout(seq2, msk2))
    ref_masked2 = jnp.sum(seq2 * msk2[..., None], axis=0) / jnp.sum(msk2)
    assert jnp.allclose(out_masked2, ref_masked2, atol=1e-4, rtol=1e-4), \
        "masked (3-D path) mismatch"

    # --- lane-dense masked path with several reduction blocks + ragged tail ---
    S3, N3, H3 = 2050, 16, 32
    seq3 = jax.random.normal(k5, (S3, N3, H3), dtype=jnp.float32)
    msk3 = (jax.random.uniform(k6, (S3, N3)) > 0.4).astype(jnp.float32)

    out_masked3 = jax.block_until_ready(avg_readout(seq3, msk3))
    ref_masked3 = jnp.sum(seq3 * msk3[..., None], axis=0) / jnp.sum(msk3)
    assert jnp.allclose(out_masked3, ref_masked3, atol=1e-4, rtol=1e-4), \
        "masked (lane-dense tiled) mismatch"

    out_mean3 = jax.block_until_ready(avg_readout(seq3))
    ref_mean3 = jnp.mean(seq3, axis=0)
    assert jnp.allclose(out_mean3, ref_mean3, atol=1e-4, rtol=1e-4), \
        "mean (tail-masked) mismatch"

    print("KERNEL_OK")
</pallas_src>

<mosaic_0001>
module attributes {stable_mosaic.version = 11 : i64} {
  func.func @_mean_sum_kernel(%arg0: i32, %arg1: i32, %arg2: i32, %arg3: memref<8x512xf32, #tpu.memory_space<vmem>>, %arg4: memref<1x1x512xf32, #tpu.memory_space<vmem>>) attributes {dimension_semantics = [#tpu.dimension_semantics<parallel>, #tpu.dimension_semantics<parallel>, #tpu.dimension_semantics<arbitrary>], iteration_bounds = array<i64: 1, 1, 1>, scalar_prefetch = 0 : i64, scratch_operands = 0 : i64, tpu.core_type = #tpu.core_type<tc>, window_params = [{transform_indices = @transform_0, window_bounds = array<i64: 8, 512>}, {transform_indices = @transform_1, window_bounds = array<i64: 1, 1, 512>}]} {
    %c0_i32 = arith.constant 0 : i32
    %0 = arith.cmpi eq, %arg2, %c0_i32 : i32
    %1 = arith.extui %0 : i1 to i32
    %c0_i32_0 = arith.constant 0 : i32
    %2 = arith.cmpi ne, %1, %c0_i32_0 : i32
    scf.if %2 {
      %cst_10 = arith.constant 0.000000e+00 : f32
      %20 = vector.broadcast %cst_10 : f32 to vector<1x1x512xf32>
      %c0_11 = arith.constant 0 : index
      %c0_12 = arith.constant 0 : index
      %c0_13 = arith.constant 0 : index
      %21 = vector.load %arg4[%c0_11, %c0_12, %c0_13] : memref<1x1x512xf32, #tpu.memory_space<vmem>>, vector<1x1x512xf32>
      tpu.vector_store %arg4[%c0_11, %c0_12, %c0_13], %20 {strides = array<i32>} : memref<1x1x512xf32, #tpu.memory_space<vmem>>, vector<1x1x512xf32>,
    } else {
    }
    %c0 = arith.constant 0 : index
    %c0_1 = arith.constant 0 : index
    %3 = vector.load %arg3[%c0, %c0_1] : memref<8x512xf32, #tpu.memory_space<vmem>>, vector<8x512xf32>
    %c1_i32 = arith.constant 1 : i32
    %4 = arith.muli %arg0, %c1_i32 : i32
    %5 = arith.addi %4, %arg2 : i32
    %c8_i32 = arith.constant 8 : i32
    %6 = arith.muli %5, %c8_i32 : i32
    %7 = tpu.iota {dimensions = array<i32: 0>} : vector<8x512xi32>
    %8 = vector.broadcast %6 : i32 to vector<8x512xi32>
    %9 = arith.addi %7, %8 : vector<8x512xi32>
    %c8_i32_2 = arith.constant 8 : i32
    %10 = vector.broadcast %c8_i32_2 : i32 to vector<8x512xi32>
    %11 = arith.cmpi slt, %9, %10 : vector<8x512xi32>
    %cst = arith.constant 0.000000e+00 : f32
    %12 = vector.broadcast %cst : f32 to vector<8x512xf32>
    %13 = arith.select %11, %3, %12 : vector<8x512xi1>, vector<8x512xf32>
    %c0_3 = arith.constant 0 : index
    %c0_4 = arith.constant 0 : index
    %c0_5 = arith.constant 0 : index
    %14 = vector.load %arg4[%c0_3, %c0_4, %c0_5] : memref<1x1x512xf32, #tpu.memory_space<vmem>>, vector<1x1x512xf32>
    %cst_6 = arith.constant dense<0.000000e+00> : vector<512xf32>
    %15 = vector.multi_reduction <add>, %13, %cst_6 [0] : vector<8x512xf32> to vector<512xf32>
    %16 = vector.shape_cast %15 : vector<512xf32> to vector<1x512xf32>
    %17 = vector.shape_cast %16 : vector<1x512xf32> to vector<1x1x512xf32>
    %18 = arith.addf %14, %17 : vector<1x1x512xf32>
    %c0_7 = arith.constant 0 : index
    %c0_8 = arith.constant 0 : index
    %c0_9 = arith.constant 0 : index
    %19 = vector.load %arg4[%c0_7, %c0_8, %c0_9] : memref<1x1x512xf32, #tpu.memory_space<vmem>>, vector<1x1x512xf32>
    tpu.vector_store %arg4[%c0_7, %c0_8, %c0_9], %18 {strides = array<i32>} : memref<1x1x512xf32, #tpu.memory_space<vmem>>, vector<1x1x512xf32>,
    return
  }
  func.func @transform_0(%arg0: i32, %arg1: i32, %arg2: i32) -> (i32, i32) {
    %c1_i32 = arith.constant 1 : i32
    %0 = arith.muli %arg0, %c1_i32 : i32
    %1 = arith.addi %0, %arg2 : i32
    %c0_i32 = arith.constant 0 : i32
    %2 = arith.minsi %1, %c0_i32 : i32
    %c0_i32_0 = arith.constant 0 : i32
    return %2, %arg1 : i32, i32
  }
  func.func @transform_1(%arg0: i32, %arg1: i32, %arg2: i32) -> (i32, i32, i32) {
    %c0_i32 = arith.constant 0 : i32
    %c0_i32_0 = arith.constant 0 : i32
    return %arg0, %c0_i32, %arg1 : i32, i32, i32
  }
}

</mosaic_0001>

<llo_original>
// kernel: tpu_custom_call.1
$region0: #{tpu_custom_call.1}
  #allocation0 [shape = 'u32[]', space=smem, size = 0x4, offset = 0x4, fixed_abs, tag = 'smem constant byte address 0x4 - core index']
  #allocation1 [shape = 'u32[144,128]{1,0:T(1,128)}', space=vmem, size = 0x12000, scoped, tag = 'internal scratch']
  %s0 = inlined_call_operand.hbm [shape: f32[8,512], index: 0, kind: input, shape index: {}]
  %s1 = inlined_call_operand.hbm [shape: f32[1,1,512], index: 1, kind: output, shape index: {}]
  %s2 = sld [smem:[#allocation0]]
  $region22: #{tpu_custom_call.1} parent=0
    _
  %s4 = ssub.s32 1, %s2
  %s5 = scalar_select 0, %s4, %s2
  $region1: #{tpu_custom_call.1} parent=0
    #allocation2 [shape = 'u8[16384]{0}', space=vmem, size = 0x4000, scoped, tag = 'input window, operand 0, single buffered']
    #allocation3 [shape = 's32[1]{0}', space=sflag, size = 0x4, scoped, tag = 'scoped memory for tpu_custom_call.1']
    #allocation4 [shape = 's32[1]{0}', space=sflag, size = 0x4, scoped, tag = 'scoped memory for tpu_custom_call.1']
    #allocation5 [shape = 'u8[2048]{0}', space=vmem, size = 0x800, scoped, tag = 'output window, operand 0, single buffered']
    %6 = vsyncpa [#allocation3], 0
    %7 = vsyncpa [#allocation4], 0
    // Predicated region
    $region2: #{tpu_custom_call.1} parent=1 // pred_check
      _
    $region3: #{tpu_custom_call.1} parent=1 // pred_check_branch
      %9 = sbr.rel (0) target = $region5
    $region4: #{tpu_custom_call.1} parent=1 // pred_region
      %s10 = sadd.s32 0, 0
      %p11 = scmp.lt.s32.totalorder %s10, 0
      %s12 = scalar_select %p11, %s10, 0
      %s14 = ssub.s32 512, 512
      %15 = vsyncadd [#allocation3], %s14
      %s16 = smul.addr %s12, 4
      %s17 = smul.addr %s16, 128
      %s18 = scalar_lea.hbm %s0, %s17
      %s20 = sshll.u32 [#allocation2], 4
      %s21 = int_to_ptr.vmem [resolvable:$true] %s20
      %23 = dma.hbm_to_vmem [thread:$0]  %s18, 512, %s21, [#allocation3]
    $region5: #{tpu_custom_call.1} parent=1 // pred_fallthru
      _
    // Predicated region
    $region6: #{tpu_custom_call.1} parent=1 // pred_check
      _
    $region7: #{tpu_custom_call.1} parent=1 // pred_check_branch
      %25 = sbr.rel (0) target = $region9
    $region8: #{tpu_custom_call.1} parent=1 // pred_region
      %26 = dma.done [#allocation3], 512
    $region9: #{tpu_custom_call.1} parent=1 // pred_fallthru
      _
    %s27 = sadd.s32 0, 0
    %p28 = scmp.lt.s32.totalorder %s27, 0
    %s29 = scalar_select %p28, %s27, 0
    %p30 = scmp.eq.s32.totalorder 0, 0
    // Predicated region
    $region10: #{tpu_custom_call.1} parent=1 // pred_check
      %p31 = pneg %p30
    $region11: #{tpu_custom_call.1} parent=1 // pred_check_branch
      %33 = sbr.rel (%p31) target = $region13
    $region12: #{tpu_custom_call.1} parent=1 // pred_region
      %v34 = vlaneseq
      %vm35 = vcmp.ge.s32.totalorder %v34, 0
      %vm36 = vcmp.lt.s32.totalorder %v34, 512
      %vm37 = vmand %vm35, %vm36
      %38 = vst.msk [vmem:[#allocation5] sm:$0xf] %vm37, 0.0
    $region13: #{tpu_custom_call.1} parent=1 // pred_fallthru
      _
    %v39 = vld [vmem:[#allocation2] sm:$0xff]
    %v40 = vld [vmem:[#allocation2 + $0x8] sm:$0xff]
    %v41 = vld [vmem:[#allocation2 + $0x10] sm:$0xff]
    %v42 = vld [vmem:[#allocation2 + $0x18] sm:$0xff]
    %s43 = sadd.s32 0, 0
    %s44 = smul.u32 %s43, 8
    %v45 = vlaneseq
    %v46 = vshrl.u32 %v45, 7
    %v47 = vstv %s44
    %v48 = vadd.s32 %v46, %v47
    %vm49 = vcmp.lt.s32.totalorder %v48, 8
    %v50 = vsel %vm49, %v39, 0.0
    %v51 = vsel %vm49, %v40, 0.0
    %v52 = vsel %vm49, %v41, 0.0
    %v53 = vsel %vm49, %v42, 0.0
    %v54 = vld [vmem:[#allocation5] sm:$0xf]
    %v55 = vrot.slane %v50, 4
    %v56 = vadd.f32 %v50, %v55
    %v57 = vrot.slane %v56, 2
    %v58 = vadd.f32 %v56, %v57
    %v59 = vrot.slane %v58, 1
    %v60 = vadd.f32 %v58, %v59
    %v61 = vrot.slane %v51, 4
    %v62 = vadd.f32 %v51, %v61
    %v63 = vrot.slane %v62, 2
    %v64 = vadd.f32 %v62, %v63
    %v65 = vrot.slane %v64, 1
    %v66 = vadd.f32 %v64, %v65
    %v67 = vrot.slane %v52, 4
    %v68 = vadd.f32 %v52, %v67
    %v69 = vrot.slane %v68, 2
    %v70 = vadd.f32 %v68, %v69
    %v71 = vrot.slane %v70, 1
    %v72 = vadd.f32 %v70, %v71
    %v73 = vrot.slane %v53, 4
    %v74 = vadd.f32 %v53, %v73
    %v75 = vrot.slane %v74, 2
    %v76 = vadd.f32 %v74, %v75
    %v77 = vrot.slane %v76, 1
    %v78 = vadd.f32 %v76, %v77
    %v83 = vcombine.low %v60, %v66
    %v84 = vcombine.low %v72, %v78
    %v86 = vunpack.c.l.s4 1966171168
    %v87 = vunpack.c.0.s8 %v86
    %v88 = vlaneseq
    %v89 = vshrl.u32 %v88, 7
    %v90 = vsub.s32 %v87, %v89
    %v91 = vrot.slane %v83, %v90
    %v93 = vunpack.c.l.s4 1966171168
    %v94 = vunpack.c.0.s8 %v93
    %v95 = vlaneseq
    %v96 = vshrl.u32 %v95, 7
    %v97 = vsub.s32 %v94, %v96
    %v98 = vrot.slane %v84, %v97
    %v99 = vcombine.low %v91, %v98
    %v101 = vunpack.c.l.s4 1966171168
    %v102 = vunpack.c.0.s8 %v101
    %v103 = vlaneseq
    %v104 = vshrl.u32 %v103, 7
    %v105 = vsub.s32 %v102, %v104
    %v106 = vrot.slane %v99, %v105
    %v108 = vadd.f32 %v54, %v106
    %v109 = vlaneseq
    %vm110 = vcmp.ge.s32.totalorder %v109, 0
    %vm111 = vcmp.lt.s32.totalorder %v109, 512
    %vm112 = vmand %vm110, %vm111
    %113 = vst.msk [vmem:[#allocation5] sm:$0xf] %vm112, %v108
    // Predicated region
    $region14: #{tpu_custom_call.1} parent=1 // pred_check
      _
    $region15: #{tpu_custom_call.1} parent=1 // pred_check_branch
      %115 = sbr.rel (0) target = $region17
    $region16: #{tpu_custom_call.1} parent=1 // pred_region
      %s117 = ssub.s32 64, 64
      %118 = vsyncadd [#allocation4], %s117
      %s120 = sshll.u32 [#allocation5], 4
      %s121 = int_to_ptr.vmem [resolvable:$true] %s120
      %123 = dma.vmem_to_hbm [thread:$0]  %s121, 64, %s1, [#allocation4]
    $region17: #{tpu_custom_call.1} parent=1 // pred_fallthru
      _
    // Predicated region
    $region18: #{tpu_custom_call.1} parent=1 // pred_check
      _
    $region19: #{tpu_custom_call.1} parent=1 // pred_check_branch
      %125 = sbr.rel (0) target = $region21
    $region20: #{tpu_custom_call.1} parent=1 // pred_region
      %126 = dma.done [#allocation4], 64
    $region21: #{tpu_custom_call.1} parent=1 // pred_fallthru
      _
    %127 = vsyncpa [#allocation3], 1
    %128 = vsyncpa [#allocation4], 1

</llo_original>
